<compile_context>
chip_gen: v7x
topology: tpu7x:2x2x1
jax: 0.10.0
libtpu: 0.0.40
codegen_flags: <defaults>
</compile_context>

<pallas_src>
import functools

import jax
import jax.numpy as jnp
from jax.experimental import pallas as pl
from jax.experimental.pallas import tpu as pltpu


LANE = 128
_MIB = 1024 * 1024


def _round_up(x, m):
    return pl.cdiv(x, m) * m


# --------------------------------------------------------------------------- #
# Kernel
# --------------------------------------------------------------------------- #
def _cls_conv_head_kernel(x_ref, w_ref, b_ref, o_ref, acc_ref, *, tc, slice_weight):
    # x_ref: (TN, TC, HW)
    # w_ref: (C, Opad) if the weight is VMEM-resident, else (TC, TO)
    # b_ref: (1, TO) f32     o_ref: (TN, TO)     acc_ref: (TN, TO) f32 scratch
    k = pl.program_id(2)

    @pl.when(k == 0)
    def _init():
        acc_ref[...] = jnp.zeros_like(acc_ref)

    # Global average pool: f32 sum over the spatial axis (the 1/(H*W) scale is
    # folded into the prepped weight, so no extra VPU pass here).
    pooled = jnp.sum(x_ref[...], axis=-1, dtype=jnp.float32)          # (TN, TC)

    if slice_weight:
        # Resident (C, Opad) weight: take the k-th reduction stripe in-kernel.
        start = pl.multiple_of(k * tc, tc)
        w = w_ref[pl.ds(start, tc), :]                                # (TC, TO)
    else:
        w = w_ref[...]                                                # (TC, TO)

    # 1x1 conv == matmul; feed the MXU in the weight dtype (bf16-native path),
    # accumulate in f32.
    acc_ref[...] += jnp.dot(pooled.astype(w.dtype), w,
                            preferred_element_type=jnp.float32)

    @pl.when(k == pl.num_programs(2) - 1)
    def _finalize():
        out = acc_ref[...] + b_ref[...].astype(jnp.float32)
        o_ref[...] = out.astype(o_ref.dtype)


# --------------------------------------------------------------------------- #
# One-time (parameter-load-time) prep
# --------------------------------------------------------------------------- #
def prepare_cls_conv_head_params(conv_weight, conv_bias, spatial_size,
                                 param_dtype=jnp.bfloat16):
    """Prep Conv2d(C, O, 1) params for the kernel.

    conv_weight: (O, C, 1, 1), conv_bias: (O,), spatial_size: H*W of the inputs
    this head will see (AdaptiveAvgPool scale is folded into the weight).

    Returns (w_cop, b_row, O):
      w_cop: (C, Opad) in `param_dtype` (bf16 by default; MXU-native, half the
             weight DMA bytes), scaled by 1/spatial_size,
      b_row: (1, Opad) f32 (bias added once in f32 at finalize),
      Opad = O rounded up to a multiple of 128 (lane-dense output stores).
    Padding columns are zero, so sliced-away outputs are exactly zero.
    """
    o, c = conv_weight.shape[0], conv_weight.shape[1]
    o_pad = _round_up(max(o, 1), LANE)
    w_co = conv_weight.reshape(o, c).T.astype(jnp.float32) * (1.0 / float(spatial_size))
    w_cop = jnp.pad(w_co, ((0, 0), (0, o_pad - o))).astype(param_dtype)
    b_row = jnp.pad(conv_bias.astype(jnp.float32), (0, o_pad - o)).reshape(1, o_pad)
    return w_cop, b_row, o


# --------------------------------------------------------------------------- #
# Tile / VMEM selection
# --------------------------------------------------------------------------- #
def _vmem_budgets():
    """Per-generation (x-block budget, default vmem limit, vmem limit cap)."""
    try:
        cap = int(pltpu.get_tpu_info().vmem_capacity_bytes)
    except Exception:
        cap = 64 * _MIB  # conservative: assume v7x's 64 MiB per TensorCore
    if cap >= 100 * _MIB:          # v5e / v6e: 128 MiB physical VMEM
        return 16 * _MIB, 64 * _MIB, 96 * _MIB
    else:                          # v7x: 64 MiB per TC
        return 6 * _MIB, 32 * _MIB, 48 * _MIB


def _pick_tn(n):
    """Batch tile: sublane-aligned (multiple of 8) and, when the batch is big
    enough, at least 2 steps on the parallel axis so v7x's 2nd TC has work."""
    if n >= 16:
        for t in (128, 64, 32, 16, 8):
            if 2 * t <= n and n % t == 0:
                return t
    return n


def _choose_tiles(n, c, hw, x_itemsize, x_block_budget):
    """Pick (TN, TC) keeping the x block under the per-generation budget.

    If the block is too big (large H*W), shrink the batch tile before shrinking
    the channel tile, so the reduction keeps few steps and stays pipelined.
    """
    hw_pad = _round_up(hw, LANE)   # lane padding of the spatial axis in VMEM
    tc_cands = sorted(
        {c} | {t for t in (8, 16, 32, 64, 128, 256, 512, 1024, 2048)
               if t < c and c % t == 0},
        reverse=True)
    tn = _pick_tn(n)
    tn_cands = [tn] + [t for t in (64, 32, 16, 8) if t < tn and n % t == 0]
    for tn_try in tn_cands:
        for tc_try in tc_cands:
            if tn_try * tc_try * hw_pad * x_itemsize <= x_block_budget:
                return tn_try, tc_try
    # TODO(synk): for extreme H*W, add a spatial reduction grid axis instead of
    # falling back to the smallest (TN, TC) block.
    return tn_cands[-1], tc_cands[-1]


def _choose_o_tile(c, o_pad, w_itemsize,
                   resident_cap=4 * _MIB, o_tile_cap=2048):
    """Decide whether the (C, Opad) weight stays VMEM-resident, else tile Opad."""
    if o_pad <= 8192 and c * o_pad * w_itemsize <= resident_cap:
        return o_pad, True
    to = o_pad
    if o_pad > o_tile_cap:
        for t in (2048, 1024, 512, 256, 128):
            if o_pad % t == 0:
                to = t
                break
    return to, False


# --------------------------------------------------------------------------- #
# Wrapper
# --------------------------------------------------------------------------- #
def cls_conv_head(x_nchw, w_cop, b_row, num_classes):
    """x_nchw: (N, C, H, W); w_cop: (C, Opad); b_row: (1, Opad) -> (N, num_classes)."""
    n, c, h, w_sp = x_nchw.shape
    hw = h * w_sp
    o_pad = w_cop.shape[1]
    assert w_cop.shape[0] == c

    x_flat = x_nchw.reshape(n, c, hw)            # (N, C, HW), no layout change

    x_budget, vmem_default, vmem_cap = _vmem_budgets()
    tn, tc = _choose_tiles(n, c, hw, x_flat.dtype.itemsize, x_budget)
    to, weight_resident = _choose_o_tile(c, o_pad, w_cop.dtype.itemsize)
    slice_weight = weight_resident and (tc < c)

    grid = (n // tn, o_pad // to, c // tc)       # reduction axis last

    if weight_resident:
        # Constant block index -> fetched once, stays VMEM-resident across the
        # whole grid (no re-DMA of the weight per batch tile).
        w_spec = pl.BlockSpec((c, o_pad), lambda i, j, k: (0, 0))
        w_block_bytes = c * o_pad * w_cop.dtype.itemsize
    else:
        w_spec = pl.BlockSpec((tc, to), lambda i, j, k: (k, j))
        w_block_bytes = tc * to * w_cop.dtype.itemsize

    # Real residency (double-buffered inputs/outputs + f32 accumulator + bias).
    x_block_bytes = tn * tc * _round_up(hw, LANE) * x_flat.dtype.itemsize
    out_block_bytes = tn * to * x_flat.dtype.itemsize
    acc_bytes = tn * to * 4
    bias_bytes = to * b_row.dtype.itemsize
    resident_bytes = (2 * x_block_bytes + 2 * w_block_bytes + 2 * out_block_bytes
                      + acc_bytes + 2 * bias_bytes + 2 * _MIB)
    vmem_limit = int(min(max(vmem_default, resident_bytes), vmem_cap))

    kernel = functools.partial(_cls_conv_head_kernel, tc=tc,
                               slice_weight=slice_weight)

    out_padded = pl.pallas_call(
        kernel,
        out_shape=jax.ShapeDtypeStruct((n, o_pad), x_nchw.dtype),
        grid_spec=pltpu.PrefetchScalarGridSpec(
            num_scalar_prefetch=0,
            grid=grid,
            in_specs=[
                pl.BlockSpec((tn, tc, hw), lambda i, j, k: (i, k, 0)),   # x tile
                w_spec,                                                  # weight
                pl.BlockSpec((1, to), lambda i, j, k: (0, j)),           # bias row
            ],
            out_specs=pl.BlockSpec((tn, to), lambda i, j, k: (i, j)),
            scratch_shapes=[pltpu.VMEM((tn, to), jnp.float32)],
        ),
        compiler_params=pltpu.CompilerParams(
            dimension_semantics=("parallel", "parallel", "arbitrary"),
            vmem_limit_bytes=vmem_limit,
        ),
    )(x_flat, w_cop, b_row)

    return out_padded[:, :num_classes]


# --------------------------------------------------------------------------- #
# Self-test
# --------------------------------------------------------------------------- #
if __name__ == "__main__":
    # Small shapes consistent with the module's forward.
    N, C, H, W = 2, 4, 16, 16
    OUT = 8

    key = jax.random.PRNGKey(0)
    kx, kw, kb = jax.random.split(key, 3)

    x = jax.random.normal(kx, (N, C, H, W), dtype=jnp.float32)
    # Deterministic synthetic parameters (Conv2d(C, OUT, 1) shapes).
    conv_weight = jax.random.normal(kw, (OUT, C, 1, 1), dtype=jnp.float32) * 0.1
    conv_bias = jax.random.normal(kb, (OUT,), dtype=jnp.float32) * 0.1

    # One-time parameter prep (model-load time, not in the call path):
    # bf16 weight with 1/(H*W) folded in, lane-padded output dim, f32 bias row.
    w_cop, b_row, num_classes = prepare_cls_conv_head_params(
        conv_weight, conv_bias, spatial_size=H * W, param_dtype=jnp.bfloat16)

    out = cls_conv_head(x, w_cop, b_row, num_classes)
    out = jax.block_until_ready(out)

    # Reference check in plain f32 JAX (same math as the PyTorch module).
    # Tolerance accounts for the intentional bf16 weight / bf16 MXU-feed path
    # (accumulation stays f32); observed error is ~1e-4 at these magnitudes.
    pooled_ref = jnp.mean(x, axis=(2, 3))                       # (N, C)
    ref = pooled_ref @ conv_weight.reshape(OUT, C).T + conv_bias
    assert out.shape == (N, OUT)
    assert jnp.allclose(out, ref, atol=2e-2, rtol=2e-2)

    print("KERNEL_OK")
</pallas_src>

<mosaic_0001>
module attributes {stable_mosaic.version = 11 : i64} {
  func.func @_cls_conv_head_kernel(%arg0: i32, %arg1: i32, %arg2: i32, %arg3: memref<2x4x256xf32, #tpu.memory_space<vmem>>, %arg4: memref<4x128xbf16, #tpu.memory_space<vmem>>, %arg5: memref<1x128xf32, #tpu.memory_space<vmem>>, %arg6: memref<2x128xf32, #tpu.memory_space<vmem>>, %arg7: memref<2x128xf32, #tpu.memory_space<vmem>>) attributes {dimension_semantics = [#tpu.dimension_semantics<parallel>, #tpu.dimension_semantics<parallel>, #tpu.dimension_semantics<arbitrary>], iteration_bounds = array<i64: 1, 1, 1>, scalar_prefetch = 0 : i64, scratch_operands = 1 : i64, tpu.core_type = #tpu.core_type<tc>, window_params = [{transform_indices = @transform_0, window_bounds = array<i64: 2, 4, 256>}, {pipeline_mode = #tpu.pipeline_mode<synchronous>, transform_indices = @transform_1, window_bounds = array<i64: 4, 128>}, {transform_indices = @transform_2, window_bounds = array<i64: 1, 128>}, {transform_indices = @transform_3, window_bounds = array<i64: 2, 128>}]} {
    %c0_i32 = arith.constant 0 : i32
    %0 = arith.cmpi eq, %arg2, %c0_i32 : i32
    %1 = arith.extui %0 : i1 to i32
    %c0_i32_0 = arith.constant 0 : i32
    %2 = arith.cmpi ne, %1, %c0_i32_0 : i32
    scf.if %2 {
      %cst_12 = arith.constant 0.000000e+00 : f32
      %14 = vector.broadcast %cst_12 : f32 to vector<2x128xf32>
      %c0_13 = arith.constant 0 : index
      %c0_14 = arith.constant 0 : index
      %15 = vector.load %arg7[%c0_13, %c0_14] : memref<2x128xf32, #tpu.memory_space<vmem>>, vector<2x128xf32>
      tpu.vector_store %arg7[%c0_13, %c0_14], %14 {strides = array<i32>} : memref<2x128xf32, #tpu.memory_space<vmem>>, vector<2x128xf32>,
    } else {
    }
    %c0 = arith.constant 0 : index
    %c0_1 = arith.constant 0 : index
    %c0_2 = arith.constant 0 : index
    %3 = vector.load %arg3[%c0, %c0_1, %c0_2] : memref<2x4x256xf32, #tpu.memory_space<vmem>>, vector<2x4x256xf32>
    %cst = arith.constant dense<0.000000e+00> : vector<2x4xf32>
    %4 = vector.multi_reduction <add>, %3, %cst [2] : vector<2x4x256xf32> to vector<2x4xf32>
    %c0_3 = arith.constant 0 : index
    %c0_4 = arith.constant 0 : index
    %5 = vector.load %arg4[%c0_3, %c0_4] : memref<4x128xbf16, #tpu.memory_space<vmem>>, vector<4x128xbf16>
    %c0_5 = arith.constant 0 : index
    %c0_6 = arith.constant 0 : index
    %6 = vector.load %arg7[%c0_5, %c0_6] : memref<2x128xf32, #tpu.memory_space<vmem>>, vector<2x128xf32>
    %7 = arith.truncf %4 : vector<2x4xf32> to vector<2x4xbf16>
    %cst_7 = arith.constant dense<0.000000e+00> : vector<2x128xf32>
    %8 = tpu.matmul %7, %5, %cst_7 {dimension_numbers = #tpu.dot_dimension_numbers<[1], [0], [0], [1], [0, 0, 1, 1], [], []>} : vector<2x4xbf16>, vector<4x128xbf16>, vector<2x128xf32> -> vector<2x128xf32>
    %9 = arith.addf %6, %8 : vector<2x128xf32>
    %c0_8 = arith.constant 0 : index
    %c0_9 = arith.constant 0 : index
    %10 = vector.load %arg7[%c0_8, %c0_9] : memref<2x128xf32, #tpu.memory_space<vmem>>, vector<2x128xf32>
    tpu.vector_store %arg7[%c0_8, %c0_9], %9 {strides = array<i32>} : memref<2x128xf32, #tpu.memory_space<vmem>>, vector<2x128xf32>,
    %c0_i32_10 = arith.constant 0 : i32
    %11 = arith.cmpi eq, %arg2, %c0_i32_10 : i32
    %12 = arith.extui %11 : i1 to i32
    %c0_i32_11 = arith.constant 0 : i32
    %13 = arith.cmpi ne, %12, %c0_i32_11 : i32
    scf.if %13 {
      %c0_12 = arith.constant 0 : index
      %c0_13 = arith.constant 0 : index
      %14 = vector.load %arg7[%c0_12, %c0_13] : memref<2x128xf32, #tpu.memory_space<vmem>>, vector<2x128xf32>
      %c0_14 = arith.constant 0 : index
      %c0_15 = arith.constant 0 : index
      %15 = vector.load %arg5[%c0_14, %c0_15] : memref<1x128xf32, #tpu.memory_space<vmem>>, vector<1x128xf32>
      %16 = vector.broadcast %15 : vector<1x128xf32> to vector<2x128xf32>
      %17 = arith.addf %14, %16 : vector<2x128xf32>
      %c0_16 = arith.constant 0 : index
      %c0_17 = arith.constant 0 : index
      %18 = vector.load %arg6[%c0_16, %c0_17] : memref<2x128xf32, #tpu.memory_space<vmem>>, vector<2x128xf32>
      tpu.vector_store %arg6[%c0_16, %c0_17], %17 {strides = array<i32>} : memref<2x128xf32, #tpu.memory_space<vmem>>, vector<2x128xf32>,
    } else {
    }
    return
  }
  func.func @transform_0(%arg0: i32, %arg1: i32, %arg2: i32) -> (i32, i32, i32) {
    %c0_i32 = arith.constant 0 : i32
    %c0_i32_0 = arith.constant 0 : i32
    return %arg0, %arg2, %c0_i32 : i32, i32, i32
  }
  func.func @transform_1(%arg0: i32, %arg1: i32, %arg2: i32) -> (i32, i32) {
    %c0_i32 = arith.constant 0 : i32
    %c0_i32_0 = arith.constant 0 : i32
    %c0_i32_1 = arith.constant 0 : i32
    return %c0_i32, %c0_i32_0 : i32, i32
  }
  func.func @transform_2(%arg0: i32, %arg1: i32, %arg2: i32) -> (i32, i32) {
    %c0_i32 = arith.constant 0 : i32
    %c0_i32_0 = arith.constant 0 : i32
    return %c0_i32, %arg1 : i32, i32
  }
  func.func @transform_3(%arg0: i32, %arg1: i32, %arg2: i32) -> (i32, i32) {
    %c0_i32 = arith.constant 0 : i32
    return %arg0, %arg1 : i32, i32
  }
}

</mosaic_0001>

<llo_original>
// kernel: tpu_custom_call.1
$region0: #{tpu_custom_call.1}
  #allocation0 [shape = 'u32[]', space=smem, size = 0x4, offset = 0x4, fixed_abs, tag = 'smem constant byte address 0x4 - core index']
  #allocation1 [shape = 'u32[144,128]{1,0:T(1,128)}', space=vmem, size = 0x12000, scoped, tag = 'internal scratch']
  #allocation2 [shape = 'f32[2,128]{1,0:T(2,128)}', space=vmem, size = 0x400, scoped, tag = 'scratch operand']
  %s0 = inlined_call_operand.hbm [shape: f32[2,4,256], index: 0, kind: input, shape index: {}]
  %s1 = inlined_call_operand.vmem [shape: bf16[4,128], index: 1, kind: input, shape index: {}]
  %s2 = inlined_call_operand.vmem [shape: f32[1,128], index: 2, kind: input, shape index: {}]
  %s3 = inlined_call_operand.hbm [shape: f32[2,128], index: 3, kind: output, shape index: {}]
  %s4 = sld [smem:[#allocation0]]
  $region34: #{tpu_custom_call.1} parent=0
    _
  %s6 = ssub.s32 1, %s4
  %s7 = scalar_select 0, %s6, %s4
  $region1: #{tpu_custom_call.1} parent=0
    #allocation3 [shape = 'u8[8192]{0}', space=vmem, size = 0x2000, scoped, tag = 'input window, operand 0, single buffered']
    #allocation4 [shape = 's32[1]{0}', space=sflag, size = 0x4, scoped, tag = 'scoped memory for tpu_custom_call.1']
    #allocation5 [shape = 's32[1]{0}', space=sflag, size = 0x4, scoped, tag = 'scoped memory for tpu_custom_call.1']
    #allocation6 [shape = 'u8[1024]{0}', space=vmem, size = 0x400, scoped, tag = 'output window, operand 0, single buffered']
    %8 = vsyncpa [#allocation4], 0
    %9 = vsyncpa [#allocation5], 0
    // Predicated region
    $region2: #{tpu_custom_call.1} parent=1 // pred_check
      _
    $region3: #{tpu_custom_call.1} parent=1 // pred_check_branch
      %11 = sbr.rel (0) target = $region5
    $region4: #{tpu_custom_call.1} parent=1 // pred_region
      %s13 = ssub.s32 256, 256
      %14 = vsyncadd [#allocation4], %s13
      %s15 = sshll.u32 [#allocation3], 4
      %s16 = int_to_ptr.vmem [resolvable:$true] %s15
      %21 = dma.hbm_to_vmem [thread:$0]  %s0, 256, %s16, [#allocation4], 128, 128, 8
    $region5: #{tpu_custom_call.1} parent=1 // pred_fallthru
      _
    // Predicated region
    $region6: #{tpu_custom_call.1} parent=1 // pred_check
      _
    $region7: #{tpu_custom_call.1} parent=1 // pred_check_branch
      %23 = sbr.rel (0) target = $region9
    $region8: #{tpu_custom_call.1} parent=1 // pred_region
      _
    $region9: #{tpu_custom_call.1} parent=1 // pred_fallthru
      _
    // Predicated region
    $region10: #{tpu_custom_call.1} parent=1 // pred_check
      _
    $region11: #{tpu_custom_call.1} parent=1 // pred_check_branch
      %25 = sbr.rel (0) target = $region13
    $region12: #{tpu_custom_call.1} parent=1 // pred_region
      _
    $region13: #{tpu_custom_call.1} parent=1 // pred_fallthru
      _
    // Predicated region
    $region14: #{tpu_custom_call.1} parent=1 // pred_check
      _
    $region15: #{tpu_custom_call.1} parent=1 // pred_check_branch
      %27 = sbr.rel (0) target = $region17
    $region16: #{tpu_custom_call.1} parent=1 // pred_region
      %28 = dma.done [#allocation4], 256
    $region17: #{tpu_custom_call.1} parent=1 // pred_fallthru
      _
    %p30 = scmp.eq.s32.totalorder 0, 0
    // Predicated region
    $region18: #{tpu_custom_call.1} parent=1 // pred_check
      %p31 = pneg %p30
    $region19: #{tpu_custom_call.1} parent=1 // pred_check_branch
      %33 = sbr.rel (%p31) target = $region21
    $region20: #{tpu_custom_call.1} parent=1 // pred_region
      %34 = vst [vmem:[#allocation2] sm:$0x3] 0.0
    $region21: #{tpu_custom_call.1} parent=1 // pred_fallthru
      _
    %v35 = vld [vmem:[#allocation3] sm:$0xff]
    %v36 = vld [vmem:[#allocation3 + $0x8] sm:$0xff]
    %v39 = vcombine.high %v35, %v35
    %v40 = vcombine.high %v36, %v36
    %vm43 = vcmask 1043456
    %v44 = vsel %vm43, %v35, 0.0
    %v45 = vsel %vm43, %v39, 0.0
    %v46 = vadd.f32 %v44, %v45
    %47 = vadd.xlane.f32.xlu0 %v46
    %v48 = vpop.xlane.xlu0 %47
    %v49 = vsel %vm43, %v36, 0.0
    %v50 = vsel %vm43, %v40, 0.0
    %v51 = vadd.f32 %v49, %v50
    %52 = vadd.xlane.f32.xlu0 %v51
    %v53 = vpop.xlane.xlu0 %52
    %v54 = vld [vmem:[%s1] sm:$0x3]
    %v55 = vld [vmem:[#allocation2] sm:$0x3]
    %v56 = vpack.c.bf16 %v48, %v48
    %v57 = vpack.c.bf16 %v53, %v53
    %v60 = vunpack.c.l.b16 %v56
    %v61 = vunpack.c.l.b16 %v57
    %v62 = vlaneseq
    %v63 = vand.u32 %v62, 127
    %v64 = vlaneseq
    %v65 = vshrl.u32 %v64, 7
    %v66 = vsub.s32 %v63, %v65
    %v67 = vrot.slane %v60, %v66
    %v68 = vlaneseq
    %v69 = vshrl.u32 %v68, 7
    %v70 = vsub.s32 %v63, %v69
    %v71 = vrot.slane %v61, %v70
    %vm72 = vcmask 1041409
    %v73 = vsel %vm72, %v71, %v67
    %v74 = vpack.c.b16 %v73, %v73
    %vm75 = vcmask 31744
    %v77 = vsel %vm75, %v74, 0
    %vm79 = vcmask 1041408
    %v81 = vsel %vm79, %v54, 0
    %83 = vmatprep.subr.bf16.mxu0 0
    %84 = vmatpush1.bf16.msra.mxu0 %v81
    %85 = vmatprep.subr.bf16.mxu0 0
    %86 = vmatpush1.bf16.msra.mxu0 0
    %87 = vmatprep.subr.bf16.mxu0 0
    %88 = vmatpush1.bf16.msra.mxu0 0
    %89 = vmatprep.subr.bf16.mxu0 0
    %90 = vmatpush1.bf16.msra.mxu0 0
    %91 = vmatprep.subr.bf16.mxu0 0
    %92 = vmatpush1.bf16.msra.mxu0 0
    %93 = vmatprep.subr.bf16.mxu0 0
    %94 = vmatpush1.bf16.msra.mxu0 0
    %95 = vmatprep.subr.bf16.mxu0 0
    %96 = vmatpush1.bf16.msra.mxu0 0
    %97 = vmatprep.subr.bf16.mxu0 0
    %98 = vmatpush1.bf16.msra.mxu0 0
    %99 = vmatprep.subr.bf16.mxu0 0
    %100 = vmatpush1.bf16.msra.mxu0 0
    %101 = vmatprep.subr.bf16.mxu0 0
    %102 = vmatpush1.bf16.msra.mxu0 0
    %103 = vmatprep.subr.bf16.mxu0 0
    %104 = vmatpush1.bf16.msra.mxu0 0
    %105 = vmatprep.subr.bf16.mxu0 0
    %106 = vmatpush1.bf16.msra.mxu0 0
    %107 = vmatprep.subr.bf16.mxu0 0
    %108 = vmatpush1.bf16.msra.mxu0 0
    %109 = vmatprep.subr.bf16.mxu0 0
    %110 = vmatpush1.bf16.msra.mxu0 0
    %111 = vmatprep.subr.bf16.mxu0 0
    %112 = vmatpush1.bf16.msra.mxu0 0
    %113 = vmatprep.subr.bf16.mxu0 0
    %114 = vmatpush1.bf16.msra.mxu0 0
    %115 = vmatprep.mubr.bf16.mxu0 0
    %116 = vmatmul.mubr.bf16.gmra.mrb[0].mxu0 %v77
    %v117 = vpop.f32.mrb[0].mxu0
    %v118 = vadd.f32 0.0, %v117
    %v119 = vpop.f32.mrb[0].mxu0
    %v120 = vpop.f32.mrb[0].mxu0
    %v121 = vpop.f32.mrb[0].mxu0
    %122 = vdwg.mxu0
    %v123 = vadd.f32 %v55, %v118
    %124 = vst [vmem:[#allocation2] sm:$0x3] %v123
    // Predicated region
    $region22: #{tpu_custom_call.1} parent=1 // pred_check
      %p125 = pneg %p30
    $region23: #{tpu_custom_call.1} parent=1 // pred_check_branch
      %127 = sbr.rel (%p125) target = $region25
    $region24: #{tpu_custom_call.1} parent=1 // pred_region
      %v128 = vld [vmem:[#allocation2] sm:$0x3]
      %v129 = vld [vmem:[%s2] sm:$0x1]
      %v131 = vlaneseq
      %v132 = vshrl.u32 %v131, 7
      %v133 = vsub.s32 0, %v132
      %v134 = vrot.slane %v129, %v133
      %v136 = vadd.f32 %v128, %v134
      %137 = vst [vmem:[#allocation6] sm:$0x3] %v136
    $region25: #{tpu_custom_call.1} parent=1 // pred_fallthru
      _
    // Predicated region
    $region26: #{tpu_custom_call.1} parent=1 // pred_check
      _
    $region27: #{tpu_custom_call.1} parent=1 // pred_check_branch
      %139 = sbr.rel (0) target = $region29
    $region28: #{tpu_custom_call.1} parent=1 // pred_region
      %s141 = ssub.s32 32, 32
      %142 = vsyncadd [#allocation5], %s141
      %s144 = sshll.u32 [#allocation6], 4
      %s145 = int_to_ptr.vmem [resolvable:$true] %s144
      %147 = dma.vmem_to_hbm [thread:$0]  %s145, 32, %s3, [#allocation5]
    $region29: #{tpu_custom_call.1} parent=1 // pred_fallthru
      _
    // Predicated region
    $region30: #{tpu_custom_call.1} parent=1 // pred_check
      _
    $region31: #{tpu_custom_call.1} parent=1 // pred_check_branch
      %149 = sbr.rel (0) target = $region33
    $region32: #{tpu_custom_call.1} parent=1 // pred_region
      %150 = dma.done [#allocation5], 32
    $region33: #{tpu_custom_call.1} parent=1 // pred_fallthru
      _
    %151 = vsyncpa [#allocation4], 1
    %152 = vsyncpa [#allocation5], 1

</llo_original>
